<compile_context>
chip_gen: v5e
topology: v5e:2x2
jax: 0.10.0
libtpu: 0.0.40
codegen_flags: <defaults>
</compile_context>

<pallas_src>
import jax
import jax.numpy as jnp
import numpy as np
from jax.experimental import pallas as pl
from jax.experimental.pallas import tpu as pltpu


def _round_up(x, m):
    return ((x + m - 1) // m) * m


def _make_istft_kernel(n_frames, K, tile_rows, hop):
    """Fused framing -> (DFT -> iDFT) -> overlap-add kernel.

    hops_ref : (C_hops_pad, hop)  bf16  hop-chunked padded signal (resident per batch)
    m_ref    : (K, K, hop, hop)   bf16  fused analysis+synthesis operator, hop-blocked
    out_ref  : (tile_rows, hop)   f32   one tile of kept output hop-chunks
    """
    half = K // 2

    def kernel(hops_ref, m_ref, out_ref):
        i = pl.program_id(1)
        r0 = pl.multiple_of(i * tile_rows, tile_rows)

        # One aligned load covering this tile plus its 2K-2 rows of halo, then
        # static shifted views (no HBM frame expansion, no dynamic misaligned DMA).
        big = hops_ref[pl.ds(r0, tile_rows + 2 * K - 2), :]
        slabs = [big[c:c + tile_rows, :] for c in range(2 * K - 1)]

        # Output row r of this tile is kept chunk c = r0 + r + K/2 of the
        # untrimmed OLA; term (j, k) contributes hops[c - k + j] @ M[j, k].
        rows = r0 + jax.lax.broadcasted_iota(jnp.int32, (tile_rows, 1), 0)
        acc = jnp.zeros((tile_rows, hop), jnp.float32)
        for k in range(K):
            part = jnp.zeros((tile_rows, hop), jnp.float32)
            for j in range(K):
                part = part + jnp.dot(
                    slabs[j - k + K - 1], m_ref[k if False else j, k, :, :],
                    preferred_element_type=jnp.float32)
            # frame f = c - k must exist (0 <= f <= F-1); masks only bite on the
            # first / last few rows of the whole signal (cheap VPU select).
            valid = (rows >= k - half) & (rows <= n_frames - 1 + k - half)
            acc = acc + jnp.where(valid, part, 0.0)
        out_ref[...] = acc

    return kernel


def istftnet_forward(x, *, n_fft, hop_length, win_length, row_tile=512):
    """Pallas implementation of iSTFTNet.forward. x: (B, T) float32 -> (B, 1, T)."""
    assert win_length == n_fft, "implementation assumes win_length == n_fft (module default)"
    assert n_fft % hop_length == 0, "implementation assumes hop divides n_fft (module default)"
    hop = hop_length
    K = n_fft // hop
    pad = n_fft // 2
    assert pad % hop == 0, "implementation assumes n_fft/2 is a multiple of hop (module default)"
    assert row_tile % 8 == 0

    x = jnp.asarray(x, jnp.float32)
    B, T = x.shape
    assert T > pad, "input too short for reflect padding"

    T_pad = T + 2 * pad
    F = 1 + (T_pad - n_fft) // hop          # number of STFT frames (center=True)
    assert F >= K, "input too short"
    out_len = hop * (F - 1)                 # torch.istft output length (center, length=None)
    n_ch_out = F - 1                        # kept output hop-chunks
    TC = min(row_tile, _round_up(n_ch_out, 8))
    n_tiles = (n_ch_out + TC - 1) // TC
    R_out_pad = n_tiles * TC
    C_in = F + K - 1                        # hop chunks of x_pad actually touched by frames
    P_top = K // 2 - 1                      # zero rows so all in-kernel halo reads are in-bounds
    C_hops_pad = _round_up(R_out_pad + 2 * K - 2, 8)

    # ---- host-precomputed constants (float64) -------------------------------
    n_freq = n_fft // 2 + 1
    n = np.arange(n_fft, dtype=np.float64)
    kk = np.arange(n_freq, dtype=np.float64)
    ang = 2.0 * np.pi * np.outer(n, kk) / n_fft
    win = 0.5 - 0.5 * np.cos(2.0 * np.pi * n / win_length)      # hann, periodic=True
    wk = np.full((n_freq,), 2.0)                                 # one-sided doubling
    wk[0] = 1.0
    wk[-1] = 1.0
    cosF = win[:, None] * np.cos(ang)                            # analysis window folded in
    sinF = win[:, None] * np.sin(ang)
    cosI = (wk[:, None] * np.cos(ang.T)) * win[None, :] / n_fft  # synthesis window folded in
    sinI = (wk[:, None] * np.sin(ang.T)) * win[None, :] / n_fft
    # Fused analysis+synthesis operator (exact here because mag/phase is an identity).
    M = cosF @ cosI + sinF @ sinI                                # (n_fft, n_fft) ~= diag(win^2)

    # OLA window-squared envelope; interior is constant for hann with >=3x overlap,
    # so fold 1/env_c into M and only correct the short edge regions afterwards.
    L_full = (F + K - 1) * hop
    env = np.zeros(L_full)
    w2 = win ** 2
    for f in range(F):
        env[f * hop: f * hop + n_fft] += w2
    t_star = ((K - 1) * hop + F * hop) // 2                      # guaranteed interior sample
    env_c = env[t_star]
    M = M / env_c
    M4 = M.reshape(K, hop, K, hop).transpose(0, 2, 1, 3)         # M4[j,k] = M[j*hop:, k*hop:] block
    M4 = jnp.asarray(M4, jnp.bfloat16)

    # TODO(synk): torch.istft errors if the kept-range envelope ~0; hann never hits this.
    env_safe = np.where(env > 1e-11, env, 1.0)
    corr = (env_c / env_safe)[pad: pad + out_len]
    dev = np.abs(corr - 1.0) > 1e-6
    if dev.any():
        ok = np.nonzero(~dev)[0]
        if ok.size == 0:
            left_n, right_n = out_len, 0
        else:
            left_n, right_n = int(ok[0]), out_len - 1 - int(ok[-1])
            if dev[left_n: out_len - right_n].any():             # non-contiguous -> full correction
                left_n, right_n = out_len, 0
    else:
        left_n = right_n = 0

    # ---- signal prep: reflect pad + hop-chunk reshape (no frame expansion) ----
    x_pad = jnp.pad(x, ((0, 0), (pad, pad)), mode="reflect")
    hops = x_pad[:, :C_in * hop].reshape(B, C_in, hop).astype(jnp.bfloat16)
    hops = jnp.pad(hops, ((0, 0), (P_top, C_hops_pad - P_top - C_in), (0, 0)))

    # ---- fused Pallas kernel -------------------------------------------------
    kernel = _make_istft_kernel(F, K, TC, hop)
    out = pl.pallas_call(
        kernel,
        out_shape=jax.ShapeDtypeStruct((B, R_out_pad, hop), jnp.float32),
        grid=(B, n_tiles),
        in_specs=[
            pl.BlockSpec((None, C_hops_pad, hop), lambda b, i: (b, 0, 0)),   # resident per batch
            pl.BlockSpec((K, K, hop, hop), lambda b, i: (0, 0, 0, 0)),       # resident operator
        ],
        out_specs=pl.BlockSpec((None, TC, hop), lambda b, i: (b, i, 0)),
        compiler_params=pltpu.CompilerParams(
            dimension_semantics=("parallel", "parallel"),   # megacore sharding on v7x
            vmem_limit_bytes=48 * 1024 * 1024,              # fits v5e/v6e (128 MiB) and v7x (64 MiB)
        ),
    )(hops, M4)

    # ---- trim + tiny edge-envelope correction (XLA glue, O(hop) work) --------
    y = out[:, :n_ch_out, :].reshape(B, out_len)
    if left_n:
        y = y.at[:, :left_n].multiply(jnp.asarray(corr[:left_n], jnp.float32))
    if right_n:
        y = y.at[:, out_len - right_n:].multiply(
            jnp.asarray(corr[out_len - right_n:], jnp.float32))
    return y[:, None, :]                                         # unsqueeze(-2)


if __name__ == "__main__":
    # Small shapes consistent with the module: n_fft=64, hop=16, win=64 (module
    # defaults are 800/200/800 -- identical code path, scaled down for the test).
    n_fft, hop, win = 64, 16, 64
    B, T = 2, 256

    key = jax.random.PRNGKey(0)
    x = jax.random.normal(key, (B, T), dtype=jnp.float32)

    y = istftnet_forward(x, n_fft=n_fft, hop_length=hop, win_length=win)
    y = jax.block_until_ready(y)

    assert y.shape == (B, 1, T), y.shape
    # STFT -> ISTFT round trip reconstructs the input (perfect-reconstruction window).
    # bf16 MXU data path leaves ~1e-2-level error; allow headroom.
    err = float(jnp.max(jnp.abs(y[:, 0, :] - x)))
    assert err < 5e-2, f"reconstruction error too large: {err}"

    print("KERNEL_OK")
</pallas_src>

<mosaic_0001>
module attributes {stable_mosaic.version = 11 : i64} {
  func.func @kernel(%arg0: i32, %arg1: i32, %arg2: memref<1x24x16xbf16, #tpu.memory_space<vmem>>, %arg3: memref<4x4x16x16xbf16, #tpu.memory_space<vmem>>, %arg4: memref<1x16x16xf32, #tpu.memory_space<vmem>>) attributes {dimension_semantics = [#tpu.dimension_semantics<parallel>, #tpu.dimension_semantics<parallel>], iteration_bounds = array<i64: 2, 1>, scalar_prefetch = 0 : i64, scratch_operands = 0 : i64, tpu.core_type = #tpu.core_type<tc>, window_params = [{transform_indices = @transform_0, window_bounds = array<i64: 1, 24, 16>}, {pipeline_mode = #tpu.pipeline_mode<synchronous>, transform_indices = @transform_1, window_bounds = array<i64: 4, 4, 16, 16>}, {transform_indices = @transform_2, window_bounds = array<i64: 1, 16, 16>}]} {
    %c16_i32 = arith.constant 16 : i32
    %0 = arith.muli %arg1, %c16_i32 : i32
    %1 = tpu.assume_multiple %0, 16 : i32
    %c0 = arith.constant 0 : index
    %2 = arith.index_cast %1 : i32 to index
    %c0_0 = arith.constant 0 : index
    %3 = vector.load %arg2[%c0, %2, %c0_0] : memref<1x24x16xbf16, #tpu.memory_space<vmem>>, vector<1x22x16xbf16>
    %4 = vector.shape_cast %3 : vector<1x22x16xbf16> to vector<22x16xbf16>
    %5 = vector.extract_strided_slice %4 {offsets = [0, 0], sizes = [16, 16], strides = [1, 1]} : vector<22x16xbf16> to vector<16x16xbf16>
    %6 = vector.extract_strided_slice %4 {offsets = [1, 0], sizes = [16, 16], strides = [1, 1]} : vector<22x16xbf16> to vector<16x16xbf16>
    %7 = vector.extract_strided_slice %4 {offsets = [2, 0], sizes = [16, 16], strides = [1, 1]} : vector<22x16xbf16> to vector<16x16xbf16>
    %8 = vector.extract_strided_slice %4 {offsets = [3, 0], sizes = [16, 16], strides = [1, 1]} : vector<22x16xbf16> to vector<16x16xbf16>
    %9 = vector.extract_strided_slice %4 {offsets = [4, 0], sizes = [16, 16], strides = [1, 1]} : vector<22x16xbf16> to vector<16x16xbf16>
    %10 = vector.extract_strided_slice %4 {offsets = [5, 0], sizes = [16, 16], strides = [1, 1]} : vector<22x16xbf16> to vector<16x16xbf16>
    %11 = vector.extract_strided_slice %4 {offsets = [6, 0], sizes = [16, 16], strides = [1, 1]} : vector<22x16xbf16> to vector<16x16xbf16>
    %12 = tpu.iota {dimensions = array<i32: 0>} : vector<16x1xi32>
    %13 = vector.broadcast %1 : i32 to vector<16x1xi32>
    %14 = arith.addi %13, %12 : vector<16x1xi32>
    %cst = arith.constant 0.000000e+00 : f32
    %15 = vector.broadcast %cst : f32 to vector<16x16xf32>
    %cst_1 = arith.constant 0.000000e+00 : f32
    %16 = vector.broadcast %cst_1 : f32 to vector<16x16xf32>
    %c0_2 = arith.constant 0 : index
    %c0_3 = arith.constant 0 : index
    %c0_4 = arith.constant 0 : index
    %c0_5 = arith.constant 0 : index
    %17 = vector.load %arg3[%c0_2, %c0_3, %c0_4, %c0_5] : memref<4x4x16x16xbf16, #tpu.memory_space<vmem>>, vector<1x1x16x16xbf16>
    %18 = vector.shape_cast %17 : vector<1x1x16x16xbf16> to vector<16x16xbf16>
    %cst_6 = arith.constant dense<0.000000e+00> : vector<16x16xf32>
    %19 = tpu.matmul %8, %18, %cst_6 {dimension_numbers = #tpu.dot_dimension_numbers<[1], [0], [0], [1], [0, 0, 1, 1], [], []>} : vector<16x16xbf16>, vector<16x16xbf16>, vector<16x16xf32> -> vector<16x16xf32>
    %20 = arith.addf %16, %19 : vector<16x16xf32>
    %c1 = arith.constant 1 : index
    %c0_7 = arith.constant 0 : index
    %c0_8 = arith.constant 0 : index
    %c0_9 = arith.constant 0 : index
    %21 = vector.load %arg3[%c1, %c0_7, %c0_8, %c0_9] : memref<4x4x16x16xbf16, #tpu.memory_space<vmem>>, vector<1x1x16x16xbf16>
    %22 = vector.shape_cast %21 : vector<1x1x16x16xbf16> to vector<16x16xbf16>
    %cst_10 = arith.constant dense<0.000000e+00> : vector<16x16xf32>
    %23 = tpu.matmul %9, %22, %cst_10 {dimension_numbers = #tpu.dot_dimension_numbers<[1], [0], [0], [1], [0, 0, 1, 1], [], []>} : vector<16x16xbf16>, vector<16x16xbf16>, vector<16x16xf32> -> vector<16x16xf32>
    %24 = arith.addf %20, %23 : vector<16x16xf32>
    %c2 = arith.constant 2 : index
    %c0_11 = arith.constant 0 : index
    %c0_12 = arith.constant 0 : index
    %c0_13 = arith.constant 0 : index
    %25 = vector.load %arg3[%c2, %c0_11, %c0_12, %c0_13] : memref<4x4x16x16xbf16, #tpu.memory_space<vmem>>, vector<1x1x16x16xbf16>
    %26 = vector.shape_cast %25 : vector<1x1x16x16xbf16> to vector<16x16xbf16>
    %cst_14 = arith.constant dense<0.000000e+00> : vector<16x16xf32>
    %27 = tpu.matmul %10, %26, %cst_14 {dimension_numbers = #tpu.dot_dimension_numbers<[1], [0], [0], [1], [0, 0, 1, 1], [], []>} : vector<16x16xbf16>, vector<16x16xbf16>, vector<16x16xf32> -> vector<16x16xf32>
    %28 = arith.addf %24, %27 : vector<16x16xf32>
    %c3 = arith.constant 3 : index
    %c0_15 = arith.constant 0 : index
    %c0_16 = arith.constant 0 : index
    %c0_17 = arith.constant 0 : index
    %29 = vector.load %arg3[%c3, %c0_15, %c0_16, %c0_17] : memref<4x4x16x16xbf16, #tpu.memory_space<vmem>>, vector<1x1x16x16xbf16>
    %30 = vector.shape_cast %29 : vector<1x1x16x16xbf16> to vector<16x16xbf16>
    %cst_18 = arith.constant dense<0.000000e+00> : vector<16x16xf32>
    %31 = tpu.matmul %11, %30, %cst_18 {dimension_numbers = #tpu.dot_dimension_numbers<[1], [0], [0], [1], [0, 0, 1, 1], [], []>} : vector<16x16xbf16>, vector<16x16xbf16>, vector<16x16xf32> -> vector<16x16xf32>
    %32 = arith.addf %28, %31 : vector<16x16xf32>
    %c-2_i32 = arith.constant -2 : i32
    %33 = vector.broadcast %c-2_i32 : i32 to vector<16x1xi32>
    %34 = arith.cmpi sge, %14, %33 : vector<16x1xi32>
    %c14_i32 = arith.constant 14 : i32
    %35 = vector.broadcast %c14_i32 : i32 to vector<16x1xi32>
    %36 = arith.cmpi sle, %14, %35 : vector<16x1xi32>
    %37 = arith.andi %34, %36 : vector<16x1xi1>
    %cst_19 = arith.constant 0.000000e+00 : f32
    %38 = vector.shape_cast %37 : vector<16x1xi1> to vector<16x1xi1>
    %39 = vector.broadcast %38 : vector<16x1xi1> to vector<16x16xi1>
    %40 = vector.broadcast %cst_19 : f32 to vector<16x16xf32>
    %41 = arith.select %39, %32, %40 : vector<16x16xi1>, vector<16x16xf32>
    %42 = arith.addf %15, %41 : vector<16x16xf32>
    %cst_20 = arith.constant 0.000000e+00 : f32
    %43 = vector.broadcast %cst_20 : f32 to vector<16x16xf32>
    %c0_21 = arith.constant 0 : index
    %c1_22 = arith.constant 1 : index
    %c0_23 = arith.constant 0 : index
    %c0_24 = arith.constant 0 : index
    %44 = vector.load %arg3[%c0_21, %c1_22, %c0_23, %c0_24] : memref<4x4x16x16xbf16, #tpu.memory_space<vmem>>, vector<1x1x16x16xbf16>
    %45 = vector.shape_cast %44 : vector<1x1x16x16xbf16> to vector<16x16xbf16>
    %cst_25 = arith.constant dense<0.000000e+00> : vector<16x16xf32>
    %46 = tpu.matmul %7, %45, %cst_25 {dimension_numbers = #tpu.dot_dimension_numbers<[1], [0], [0], [1], [0, 0, 1, 1], [], []>} : vector<16x16xbf16>, vector<16x16xbf16>, vector<16x16xf32> -> vector<16x16xf32>
    %47 = arith.addf %43, %46 : vector<16x16xf32>
    %c1_26 = arith.constant 1 : index
    %c1_27 = arith.constant 1 : index
    %c0_28 = arith.constant 0 : index
    %c0_29 = arith.constant 0 : index
    %48 = vector.load %arg3[%c1_26, %c1_27, %c0_28, %c0_29] : memref<4x4x16x16xbf16, #tpu.memory_space<vmem>>, vector<1x1x16x16xbf16>
    %49 = vector.shape_cast %48 : vector<1x1x16x16xbf16> to vector<16x16xbf16>
    %cst_30 = arith.constant dense<0.000000e+00> : vector<16x16xf32>
    %50 = tpu.matmul %8, %49, %cst_30 {dimension_numbers = #tpu.dot_dimension_numbers<[1], [0], [0], [1], [0, 0, 1, 1], [], []>} : vector<16x16xbf16>, vector<16x16xbf16>, vector<16x16xf32> -> vector<16x16xf32>
    %51 = arith.addf %47, %50 : vector<16x16xf32>
    %c2_31 = arith.constant 2 : index
    %c1_32 = arith.constant 1 : index
    %c0_33 = arith.constant 0 : index
    %c0_34 = arith.constant 0 : index
    %52 = vector.load %arg3[%c2_31, %c1_32, %c0_33, %c0_34] : memref<4x4x16x16xbf16, #tpu.memory_space<vmem>>, vector<1x1x16x16xbf16>
    %53 = vector.shape_cast %52 : vector<1x1x16x16xbf16> to vector<16x16xbf16>
    %cst_35 = arith.constant dense<0.000000e+00> : vector<16x16xf32>
    %54 = tpu.matmul %9, %53, %cst_35 {dimension_numbers = #tpu.dot_dimension_numbers<[1], [0], [0], [1], [0, 0, 1, 1], [], []>} : vector<16x16xbf16>, vector<16x16xbf16>, vector<16x16xf32> -> vector<16x16xf32>
    %55 = arith.addf %51, %54 : vector<16x16xf32>
    %c3_36 = arith.constant 3 : index
    %c1_37 = arith.constant 1 : index
    %c0_38 = arith.constant 0 : index
    %c0_39 = arith.constant 0 : index
    %56 = vector.load %arg3[%c3_36, %c1_37, %c0_38, %c0_39] : memref<4x4x16x16xbf16, #tpu.memory_space<vmem>>, vector<1x1x16x16xbf16>
    %57 = vector.shape_cast %56 : vector<1x1x16x16xbf16> to vector<16x16xbf16>
    %cst_40 = arith.constant dense<0.000000e+00> : vector<16x16xf32>
    %58 = tpu.matmul %10, %57, %cst_40 {dimension_numbers = #tpu.dot_dimension_numbers<[1], [0], [0], [1], [0, 0, 1, 1], [], []>} : vector<16x16xbf16>, vector<16x16xbf16>, vector<16x16xf32> -> vector<16x16xf32>
    %59 = arith.addf %55, %58 : vector<16x16xf32>
    %c-1_i32 = arith.constant -1 : i32
    %60 = vector.broadcast %c-1_i32 : i32 to vector<16x1xi32>
    %61 = arith.cmpi sge, %14, %60 : vector<16x1xi32>
    %c15_i32 = arith.constant 15 : i32
    %62 = vector.broadcast %c15_i32 : i32 to vector<16x1xi32>
    %63 = arith.cmpi sle, %14, %62 : vector<16x1xi32>
    %64 = arith.andi %61, %63 : vector<16x1xi1>
    %cst_41 = arith.constant 0.000000e+00 : f32
    %65 = vector.shape_cast %64 : vector<16x1xi1> to vector<16x1xi1>
    %66 = vector.broadcast %65 : vector<16x1xi1> to vector<16x16xi1>
    %67 = vector.broadcast %cst_41 : f32 to vector<16x16xf32>
    %68 = arith.select %66, %59, %67 : vector<16x16xi1>, vector<16x16xf32>
    %69 = arith.addf %42, %68 : vector<16x16xf32>
    %cst_42 = arith.constant 0.000000e+00 : f32
    %70 = vector.broadcast %cst_42 : f32 to vector<16x16xf32>
    %c0_43 = arith.constant 0 : index
    %c2_44 = arith.constant 2 : index
    %c0_45 = arith.constant 0 : index
    %c0_46 = arith.constant 0 : index
    %71 = vector.load %arg3[%c0_43, %c2_44, %c0_45, %c0_46] : memref<4x4x16x16xbf16, #tpu.memory_space<vmem>>, vector<1x1x16x16xbf16>
    %72 = vector.shape_cast %71 : vector<1x1x16x16xbf16> to vector<16x16xbf16>
    %cst_47 = arith.constant dense<0.000000e+00> : vector<16x16xf32>
    %73 = tpu.matmul %6, %72, %cst_47 {dimension_numbers = #tpu.dot_dimension_numbers<[1], [0], [0], [1], [0, 0, 1, 1], [], []>} : vector<16x16xbf16>, vector<16x16xbf16>, vector<16x16xf32> -> vector<16x16xf32>
    %74 = arith.addf %70, %73 : vector<16x16xf32>
    %c1_48 = arith.constant 1 : index
    %c2_49 = arith.constant 2 : index
    %c0_50 = arith.constant 0 : index
    %c0_51 = arith.constant 0 : index
    %75 = vector.load %arg3[%c1_48, %c2_49, %c0_50, %c0_51] : memref<4x4x16x16xbf16, #tpu.memory_space<vmem>>, vector<1x1x16x16xbf16>
    %76 = vector.shape_cast %75 : vector<1x1x16x16xbf16> to vector<16x16xbf16>
    %cst_52 = arith.constant dense<0.000000e+00> : vector<16x16xf32>
    %77 = tpu.matmul %7, %76, %cst_52 {dimension_numbers = #tpu.dot_dimension_numbers<[1], [0], [0], [1], [0, 0, 1, 1], [], []>} : vector<16x16xbf16>, vector<16x16xbf16>, vector<16x16xf32> -> vector<16x16xf32>
    %78 = arith.addf %74, %77 : vector<16x16xf32>
    %c2_53 = arith.constant 2 : index
    %c2_54 = arith.constant 2 : index
    %c0_55 = arith.constant 0 : index
    %c0_56 = arith.constant 0 : index
    %79 = vector.load %arg3[%c2_53, %c2_54, %c0_55, %c0_56] : memref<4x4x16x16xbf16, #tpu.memory_space<vmem>>, vector<1x1x16x16xbf16>
    %80 = vector.shape_cast %79 : vector<1x1x16x16xbf16> to vector<16x16xbf16>
    %cst_57 = arith.constant dense<0.000000e+00> : vector<16x16xf32>
    %81 = tpu.matmul %8, %80, %cst_57 {dimension_numbers = #tpu.dot_dimension_numbers<[1], [0], [0], [1], [0, 0, 1, 1], [], []>} : vector<16x16xbf16>, vector<16x16xbf16>, vector<16x16xf32> -> vector<16x16xf32>
    %82 = arith.addf %78, %81 : vector<16x16xf32>
    %c3_58 = arith.constant 3 : index
    %c2_59 = arith.constant 2 : index
    %c0_60 = arith.constant 0 : index
    %c0_61 = arith.constant 0 : index
    %83 = vector.load %arg3[%c3_58, %c2_59, %c0_60, %c0_61] : memref<4x4x16x16xbf16, #tpu.memory_space<vmem>>, vector<1x1x16x16xbf16>
    %84 = vector.shape_cast %83 : vector<1x1x16x16xbf16> to vector<16x16xbf16>
    %cst_62 = arith.constant dense<0.000000e+00> : vector<16x16xf32>
    %85 = tpu.matmul %9, %84, %cst_62 {dimension_numbers = #tpu.dot_dimension_numbers<[1], [0], [0], [1], [0, 0, 1, 1], [], []>} : vector<16x16xbf16>, vector<16x16xbf16>, vector<16x16xf32> -> vector<16x16xf32>
    %86 = arith.addf %82, %85 : vector<16x16xf32>
    %c0_i32 = arith.constant 0 : i32
    %87 = vector.broadcast %c0_i32 : i32 to vector<16x1xi32>
    %88 = arith.cmpi sge, %14, %87 : vector<16x1xi32>
    %c16_i32_63 = arith.constant 16 : i32
    %89 = vector.broadcast %c16_i32_63 : i32 to vector<16x1xi32>
    %90 = arith.cmpi sle, %14, %89 : vector<16x1xi32>
    %91 = arith.andi %88, %90 : vector<16x1xi1>
    %cst_64 = arith.constant 0.000000e+00 : f32
    %92 = vector.shape_cast %91 : vector<16x1xi1> to vector<16x1xi1>
    %93 = vector.broadcast %92 : vector<16x1xi1> to vector<16x16xi1>
    %94 = vector.broadcast %cst_64 : f32 to vector<16x16xf32>
    %95 = arith.select %93, %86, %94 : vector<16x16xi1>, vector<16x16xf32>
    %96 = arith.addf %69, %95 : vector<16x16xf32>
    %cst_65 = arith.constant 0.000000e+00 : f32
    %97 = vector.broadcast %cst_65 : f32 to vector<16x16xf32>
    %c0_66 = arith.constant 0 : index
    %c3_67 = arith.constant 3 : index
    %c0_68 = arith.constant 0 : index
    %c0_69 = arith.constant 0 : index
    %98 = vector.load %arg3[%c0_66, %c3_67, %c0_68, %c0_69] : memref<4x4x16x16xbf16, #tpu.memory_space<vmem>>, vector<1x1x16x16xbf16>
    %99 = vector.shape_cast %98 : vector<1x1x16x16xbf16> to vector<16x16xbf16>
    %cst_70 = arith.constant dense<0.000000e+00> : vector<16x16xf32>
    %100 = tpu.matmul %5, %99, %cst_70 {dimension_numbers = #tpu.dot_dimension_numbers<[1], [0], [0], [1], [0, 0, 1, 1], [], []>} : vector<16x16xbf16>, vector<16x16xbf16>, vector<16x16xf32> -> vector<16x16xf32>
    %101 = arith.addf %97, %100 : vector<16x16xf32>
    %c1_71 = arith.constant 1 : index
    %c3_72 = arith.constant 3 : index
    %c0_73 = arith.constant 0 : index
    %c0_74 = arith.constant 0 : index
    %102 = vector.load %arg3[%c1_71, %c3_72, %c0_73, %c0_74] : memref<4x4x16x16xbf16, #tpu.memory_space<vmem>>, vector<1x1x16x16xbf16>
    %103 = vector.shape_cast %102 : vector<1x1x16x16xbf16> to vector<16x16xbf16>
    %cst_75 = arith.constant dense<0.000000e+00> : vector<16x16xf32>
    %104 = tpu.matmul %6, %103, %cst_75 {dimension_numbers = #tpu.dot_dimension_numbers<[1], [0], [0], [1], [0, 0, 1, 1], [], []>} : vector<16x16xbf16>, vector<16x16xbf16>, vector<16x16xf32> -> vector<16x16xf32>
    %105 = arith.addf %101, %104 : vector<16x16xf32>
    %c2_76 = arith.constant 2 : index
    %c3_77 = arith.constant 3 : index
    %c0_78 = arith.constant 0 : index
    %c0_79 = arith.constant 0 : index
    %106 = vector.load %arg3[%c2_76, %c3_77, %c0_78, %c0_79] : memref<4x4x16x16xbf16, #tpu.memory_space<vmem>>, vector<1x1x16x16xbf16>
    %107 = vector.shape_cast %106 : vector<1x1x16x16xbf16> to vector<16x16xbf16>
    %cst_80 = arith.constant dense<0.000000e+00> : vector<16x16xf32>
    %108 = tpu.matmul %7, %107, %cst_80 {dimension_numbers = #tpu.dot_dimension_numbers<[1], [0], [0], [1], [0, 0, 1, 1], [], []>} : vector<16x16xbf16>, vector<16x16xbf16>, vector<16x16xf32> -> vector<16x16xf32>
    %109 = arith.addf %105, %108 : vector<16x16xf32>
    %c3_81 = arith.constant 3 : index
    %c3_82 = arith.constant 3 : index
    %c0_83 = arith.constant 0 : index
    %c0_84 = arith.constant 0 : index
    %110 = vector.load %arg3[%c3_81, %c3_82, %c0_83, %c0_84] : memref<4x4x16x16xbf16, #tpu.memory_space<vmem>>, vector<1x1x16x16xbf16>
    %111 = vector.shape_cast %110 : vector<1x1x16x16xbf16> to vector<16x16xbf16>
    %cst_85 = arith.constant dense<0.000000e+00> : vector<16x16xf32>
    %112 = tpu.matmul %8, %111, %cst_85 {dimension_numbers = #tpu.dot_dimension_numbers<[1], [0], [0], [1], [0, 0, 1, 1], [], []>} : vector<16x16xbf16>, vector<16x16xbf16>, vector<16x16xf32> -> vector<16x16xf32>
    %113 = arith.addf %109, %112 : vector<16x16xf32>
    %c1_i32 = arith.constant 1 : i32
    %114 = vector.broadcast %c1_i32 : i32 to vector<16x1xi32>
    %115 = arith.cmpi sge, %14, %114 : vector<16x1xi32>
    %c17_i32 = arith.constant 17 : i32
    %116 = vector.broadcast %c17_i32 : i32 to vector<16x1xi32>
    %117 = arith.cmpi sle, %14, %116 : vector<16x1xi32>
    %118 = arith.andi %115, %117 : vector<16x1xi1>
    %cst_86 = arith.constant 0.000000e+00 : f32
    %119 = vector.shape_cast %118 : vector<16x1xi1> to vector<16x1xi1>
    %120 = vector.broadcast %119 : vector<16x1xi1> to vector<16x16xi1>
    %121 = vector.broadcast %cst_86 : f32 to vector<16x16xf32>
    %122 = arith.select %120, %113, %121 : vector<16x16xi1>, vector<16x16xf32>
    %123 = arith.addf %96, %122 : vector<16x16xf32>
    %c0_87 = arith.constant 0 : index
    %c0_88 = arith.constant 0 : index
    %c0_89 = arith.constant 0 : index
    %124 = vector.load %arg4[%c0_87, %c0_88, %c0_89] : memref<1x16x16xf32, #tpu.memory_space<vmem>>, vector<1x16x16xf32>
    %125 = vector.shape_cast %124 : vector<1x16x16xf32> to vector<16x16xf32>
    %126 = vector.shape_cast %123 : vector<16x16xf32> to vector<1x16x16xf32>
    tpu.vector_store %arg4[%c0_87, %c0_88, %c0_89], %126 {strides = array<i32>} : memref<1x16x16xf32, #tpu.memory_space<vmem>>, vector<1x16x16xf32>,
    return
  }
  func.func @transform_0(%arg0: i32, %arg1: i32) -> (i32, i32, i32) {
    %c0_i32 = arith.constant 0 : i32
    %c0_i32_0 = arith.constant 0 : i32
    %c0_i32_1 = arith.constant 0 : i32
    return %arg0, %c0_i32, %c0_i32_0 : i32, i32, i32
  }
  func.func @transform_1(%arg0: i32, %arg1: i32) -> (i32, i32, i32, i32) {
    %c0_i32 = arith.constant 0 : i32
    %c0_i32_0 = arith.constant 0 : i32
    %c0_i32_1 = arith.constant 0 : i32
    %c0_i32_2 = arith.constant 0 : i32
    %c0_i32_3 = arith.constant 0 : i32
    return %c0_i32, %c0_i32_0, %c0_i32_1, %c0_i32_2 : i32, i32, i32, i32
  }
  func.func @transform_2(%arg0: i32, %arg1: i32) -> (i32, i32, i32) {
    %c0_i32 = arith.constant 0 : i32
    %c0_i32_0 = arith.constant 0 : i32
    return %arg0, %arg1, %c0_i32 : i32, i32, i32
  }
}

</mosaic_0001>

<llo_original>
// kernel: tpu_custom_call.1
$region0: #{tpu_custom_call.1}
  #allocation0 [shape = 'u32[]', space=smem, size = 0x4, offset = 0x4, fixed_abs, tag = 'smem constant byte address 0x4 - core index']
  #allocation1 [shape = 'u32[72,128]{1,0:T(1,128)}', space=vmem, size = 0x9000, scoped, tag = 'internal scratch']
  %s0 = inlined_call_operand.vmem [shape: bf16[2,24,16], index: 0, kind: input, shape index: {}]
  %s1 = inlined_call_operand.hbm [shape: bf16[4,4,16,16], index: 1, kind: input, shape index: {}]
  %s2 = inlined_call_operand.hbm [shape: f32[2,16,16], index: 2, kind: output, shape index: {}]
  %s3 = sld [smem:[#allocation0]]
  $region45: #{tpu_custom_call.1} parent=0
    _
  %s5 = ssub.s32 1, %s3
  %s6 = scalar_select 0, %s5, %s3
  $region1: #{tpu_custom_call.1} parent=0
    #allocation2 [shape = 'u8[65536]{0}', space=vmem, size = 0x10000, scoped, tag = 'input window, operand 1, single buffered']
    #allocation3 [shape = 's32[2]{0}', space=sflag, size = 0x8, scoped, tag = 'scoped memory for tpu_custom_call.1']
    #allocation4 [shape = 's32[2]{0}', space=sflag, size = 0x8, scoped, tag = 'scoped memory for tpu_custom_call.1']
    #allocation5 [shape = 'u8[16384]{0}', space=vmem, size = 0x4000, scoped, tag = 'output window, operand 0']
    %7 = vsyncpa [#allocation3], 0
    %8 = vsyncpa [#allocation4], 0
    %s9 = scalar_lea.sflag [#allocation4], 1
    %10 = vsyncpa %s9, 0
    loop: start=0, step=1, limit=4
    $region2: #{tpu_custom_call.1} parent=1 // loop_pre_header
      _
    $region3: #{tpu_custom_call.1} parent=1 // loop_header
      %s12 = sphi 0, %s16
      %p13 = scmp.ge.s32.totalorder %s12, 4
      %s19 = sphi 0, %s31
      %s20 = sphi 0, %s27
      %s21 = sphi 0, %s19
      %s22 = sphi 0, %s20
      %s23 = sphi 0, %s21
      %s24 = sphi 0, %s22
      %s34 = sphi 0, %s36
      %s37 = sphi 0, %s34
      %s38 = sphi 0, %s37
      %s54 = sphi 0, %s38
      %s58 = sphi 0, %s58
      %s60 = sphi 0, %s58
      %s61 = sphi 0, %s60
      %s75 = sphi 0, %s61
      %s83 = sphi 0, %s85
      %s86 = sphi 0, %s83
      %s87 = sphi 0, %s86
      %s103 = sphi 0, %s87
    $region4: #{tpu_custom_call.1} parent=1 // loop_header_branch
      %15 = sbr.rel (%p13) target = $region8
    $region5: #{tpu_custom_call.1} parent=1 // loop_body
      %s17 = ssub.s32 %s12, 1
      %s18 = ssub.s32 %s12, 2
      %s25 = sadd.s32 1, %s20
      %p26 = scmp.ge.s32.totalorder %s25, 1
      %s27 = scalar_select %p26, 0, %s25
      %s28 = sadd.s32 1, %s19
      %s29 = scalar_select %p26, %s28, %s19
      %p30 = scmp.ge.s32.totalorder %s29, 2
      %s31 = scalar_select %p30, 0, %s29
      %s32 = ssub.s32 %s19, %s31
      %p33 = scmp.eq.s32.totalorder %s32, 0
      %s35 = sadd.s32 %s34, 1
      %s36 = scalar_select %p33, %s34, %s35
      %p39 = pneg %p33
      %p40 = scmp.eq.s32.totalorder %s12, 1
      %p41 = por %p39, %p40
      %p42 = scmp.ne.s32.totalorder %s34, %s37
      %p43 = scmp.eq.s32.totalorder %s12, 0
      %p44 = por %p42, %p43
      %p45 = scmp.ne.s32.totalorder %s34, %s37
      %p46 = scmp.eq.s32.totalorder %s17, 1
      %p47 = por %p45, %p46
      %p48 = scmp.ne.s32.totalorder %s37, %s38
      %p49 = scmp.eq.s32.totalorder %s17, 0
      %p50 = por %p48, %p49
      %p51 = scmp.ne.s32.totalorder %s37, %s38
      %p52 = scmp.eq.s32.totalorder %s18, 1
      %p53 = por %p51, %p52
      %p55 = scmp.ne.s32.totalorder %s38, %s54
      %p56 = scmp.eq.s32.totalorder %s18, 0
      %p57 = por %p55, %p56
      %s59 = sadd.s32 %s58, 1
      %p62 = scmp.eq.s32.totalorder %s12, 1
      %p63 = scmp.ne.s32.totalorder %s58, %s60
      %p64 = scmp.eq.s32.totalorder %s12, 0
      %p65 = por %p63, %p64
      %p66 = scmp.ne.s32.totalorder %s58, %s60
      %p67 = scmp.eq.s32.totalorder %s17, 1
      %p68 = por %p66, %p67
      %p69 = scmp.ne.s32.totalorder %s60, %s61
      %p70 = scmp.eq.s32.totalorder %s17, 0
      %p71 = por %p69, %p70
      %p72 = scmp.ne.s32.totalorder %s60, %s61
      %p73 = scmp.eq.s32.totalorder %s18, 1
      %p74 = por %p72, %p73
      %p76 = scmp.ne.s32.totalorder %s61, %s75
      %p77 = scmp.eq.s32.totalorder %s18, 0
      %p78 = por %p76, %p77
      %s79 = ssub.s32 %s19, %s31
      %s80 = ssub.s32 %s20, %s27
      %s81 = sor.u32 %s79, %s80
      %p82 = scmp.eq.s32.totalorder %s81, 0
      %s84 = sadd.s32 %s83, 1
      %s85 = scalar_select %p82, %s83, %s84
      %p88 = pneg %p82
      %p89 = scmp.eq.s32.totalorder %s12, 1
      %p90 = por %p88, %p89
      %p91 = scmp.ne.s32.totalorder %s83, %s86
      %p92 = scmp.eq.s32.totalorder %s12, 0
      %p93 = por %p91, %p92
      %p94 = scmp.ne.s32.totalorder %s83, %s86
      %p95 = scmp.eq.s32.totalorder %s17, 1
      %p96 = por %p94, %p95
      %p97 = scmp.ne.s32.totalorder %s86, %s87
      %p98 = scmp.eq.s32.totalorder %s17, 0
      %p99 = por %p97, %p98
      %p100 = scmp.ne.s32.totalorder %s86, %s87
      %p101 = scmp.eq.s32.totalorder %s18, 1
      %p102 = por %p100, %p101
      %p104 = scmp.ne.s32.totalorder %s87, %s103
      %p105 = scmp.eq.s32.totalorder %s18, 0
      %p106 = por %p104, %p105
      %p107 = scmp.le.s32.totalorder 1, %s12
      %p108 = scmp.lt.s32.totalorder %s12, 3
      %p109 = pnand %p107, %p108
      %p110 = pneg %p109
      // Predicated region
      $region9: #{tpu_custom_call.1} parent=5 // pred_check
        _
      $region10: #{tpu_custom_call.1} parent=5 // pred_check_branch
        %112 = sbr.rel (%p109) target = $region12
      $region11: #{tpu_custom_call.1} parent=5 // pred_region
        %s113 = ssub.s32 %s12, 1
        // Predicated region
        $region13: #{tpu_custom_call.1} parent=11 // pred_check
          %p114 = pneg %p71
        $region14: #{tpu_custom_call.1} parent=11 // pred_check_branch
          %116 = sbr.rel (%p114) target = $region16
        $region15: #{tpu_custom_call.1} parent=11 // pred_region
          %118 = vsyncadd [#allocation3], 0
          %s119 = sshll.u32 %s1, 4
          %s120 = int_to_ptr.hbm [resolvable:$true] %s119
          %s121 = sshll.u32 [#allocation2], 4
          %s122 = int_to_ptr.vmem [resolvable:$true] %s121
          %127 = dma.hbm_to_vmem [thread:$0]  %s120, 2048, %s122, [#allocation3], 64, 64, 4
        $region16: #{tpu_custom_call.1} parent=11 // pred_fallthru
          _
      $region12: #{tpu_custom_call.1} parent=5 // pred_fallthru
        _
      %p128 = scmp.lt.s32.totalorder %s12, 2
      // Predicated region
      $region17: #{tpu_custom_call.1} parent=5 // pred_check
        %p129 = pneg %p128
      $region18: #{tpu_custom_call.1} parent=5 // pred_check_branch
        %131 = sbr.rel (%p129) target = $region20
      $region19: #{tpu_custom_call.1} parent=5 // pred_region
        // Predicated region
        $region21: #{tpu_custom_call.1} parent=19 // pred_check
          %p132 = pneg %p44
        $region22: #{tpu_custom_call.1} parent=19 // pred_check_branch
          %134 = sbr.rel (%p132) target = $region24
        $region23: #{tpu_custom_call.1} parent=19 // pred_region
          %p135 = scmp.lt.s32.totalorder %s19, 1
          %s136 = scalar_select %p135, %s19, 1
          %s137 = smul.addr %s136, 3
          %s138 = smul.addr %s137, 4
          %s139 = scalar_lea.vmem %s0, %s138
        $region24: #{tpu_custom_call.1} parent=19 // pred_fallthru
          _
      $region20: #{tpu_custom_call.1} parent=5 // pred_fallthru
        _
      %p140 = scmp.le.s32.totalorder 1, %s12
      %p141 = scmp.lt.s32.totalorder %s12, 3
      %p142 = pnand %p140, %p141
      %p143 = pneg %p142
      // Predicated region
      $region25: #{tpu_custom_call.1} parent=5 // pred_check
        _
      $region26: #{tpu_custom_call.1} parent=5 // pred_check_branch
        %145 = sbr.rel (%p142) target = $region28
      $region27: #{tpu_custom_call.1} parent=5 // pred_region
        %s146 = ssub.s32 %s12, 1
        // Predicated region
        $region29: #{tpu_custom_call.1} parent=27 // pred_check
          %p147 = pneg %p71
        $region30: #{tpu_custom_call.1} parent=27 // pred_check_branch
          %149 = sbr.rel (%p147) target = $region32
        $region31: #{tpu_custom_call.1} parent=27 // pred_region
          %151 = dma.done [#allocation3], 2048
        $region32: #{tpu_custom_call.1} parent=27 // pred_fallthru
          _
        %p152 = scmp.lt.s32.totalorder %s21, 1
        %s153 = scalar_select %p152, %s21, 1
        %s154 = smul.addr %s153, 3
        %s155 = smul.addr %s154, 4
        %s156 = scalar_lea.vmem %s0, %s155
        %p157 = pneg %p50
        %p158 = pneg %p47
        %p159 = pneg %p71
        %p160 = pneg %p68
        %p161 = pneg %p99
        %p162 = pneg %p96
        %s163 = sand.u32 %s86, 1
        %s164 = scalar_lea.sflag [#allocation4], %s163
        %s165 = sand.u32 %s86, 1
        %s166 = smul.addr %s165, 16
        %s167 = scalar_lea.vmem [#allocation5], %s166
        %p168 = scmp.lt.s32.totalorder %s21, 1
        %s169 = scalar_select %p168, %s21, 1
        %s170 = smul.addr %s169, 3
        %s171 = smul.addr %s170, 4
        %s172 = scalar_lea.vmem %s0, %s171
        %s173 = smul.u32 2, %s22
        %s175 = smul.u32 %s22, 16
        %s176 = sshra.s32 %s175, 3
        %s177 = sand.u32 %s175, 7
        %s178 = smul.addr %s176, 4
        %s179 = scalar_lea.vmem %s172, %s178
        %v180 = vld [vmem:[%s179] sm:$0xf]
        %v181 = vld [vmem:[%s179 + $0x4] sm:$0xf]
        %v182 = vld [vmem:[%s179 + $0x8] sm:$0x7]
        %v183 = vlaneseq
        %v184 = vshrl.u32 %v183, 7
        %v185 = vadd.s32 %v184, 8
        %v186 = vstv %s175
        %v187 = vadd.s32 %v186, %v184
        %v188 = vadd.s32 %v186, %v185
        %v189 = vld [vmem:[#allocation2] sm:$0xf]
        %v190 = vld [vmem:[#allocation2 + $0x4] sm:$0xf]
        %s191 = scalar_lea.vmem [#allocation2], 32
        %v192 = vld [vmem:[%s191] sm:$0xf]
        %v193 = vld [vmem:[%s191 + $0x4] sm:$0xf]
        %v197 = vunpack.c.l.b16 %v180
        %v198 = vunpack.c.l.b16 %v181
        %v199 = vunpack.c.l.b16 %v182
        %v200 = vpack.c.b16 %v198, %v197
        %v201 = vpack.c.b16 %v199, %v199
        %vm202 = vcmask 1045504
        %v203 = vrot.slane %v200, 2
        %v204 = vrot.slane %v201, 2
        %v205 = vsel %vm202, %v203, %v204
        %v208 = vunpack.c.l.b16 %v192
        %v209 = vunpack.c.l.b16 %v193
        %v210 = vpack.c.b16 %v209, %v208
        %vm212 = vcmask 130048
        %v214 = vsel %vm212, %v205, 0
        %216 = vmatpush.bf16.msra.mxu0 0
        %217 = vmatpush.bf16.msra.mxu0 0
        %218 = vmatpush.bf16.msra.mxu0 0
        %219 = vmatpush.bf16.msra.mxu0 0
        %220 = vmatpush.bf16.msra.mxu0 0
        %221 = vmatpush.bf16.msra.mxu0 0
        %222 = vmatpush.bf16.msra.mxu0 0
        %223 = vmatpush.bf16.msra.mxu0 %v210
        %224 = vmatmul.bf16.gmra.mxu0 %v214
        %v225 = vpop.f32.mrf.mxu0
        %v226 = vadd.f32 0.0, %v225
        %v227 = vpop.f32.mrf.mxu0
        %v228 = vadd.f32 0.0, %v227
        %229 = vdwg.mxu0
        %vm230 = vsmask.f32 6400
        %v232 = vshrl.u32 %v200, 16
        %v234 = vrot.slane %v232, 1
        %v235 = vshll.u32 %v200, 16
        %v237 = vrot.slane %v235, 2
        %v238 = vor.u32 %v234, %v237
        %v240 = vshrl.u32 %v201, 16
        %v242 = vrot.slane %v240, 1
        %v243 = vshll.u32 %v201, 16
        %v245 = vrot.slane %v243, 2
        %v246 = vor.u32 %v242, %v245
        %v247 = vsel %vm230, %v238, %v246
        %v250 = vunpack.c.l.b16 %v189
        %v251 = vunpack.c.l.b16 %v190
        %v252 = vpack.c.b16 %v251, %v250
        %v255 = vsel %vm212, %v247, 0
        %257 = vmatpush.bf16.msra.mxu0 0
        %258 = vmatpush.bf16.msra.mxu0 0
        %259 = vmatpush.bf16.msra.mxu0 0
        %260 = vmatpush.bf16.msra.mxu0 0
        %261 = vmatpush.bf16.msra.mxu0 0
        %262 = vmatpush.bf16.msra.mxu0 0
        %263 = vmatpush.bf16.msra.mxu0 0
        %264 = vmatpush.bf16.msra.mxu0 %v252
        %265 = vmatmul.bf16.gmra.mxu0 %v255
        %v266 = vpop.f32.mrf.mxu0
        %v267 = vadd.f32 %v226, %v266
        %v268 = vpop.f32.mrf.mxu0
        %v269 = vadd.f32 %v228, %v268
        %270 = vdwg.mxu0
        %s271 = scalar_lea.vmem [#allocation2], 64
        %v272 = vld [vmem:[%s271] sm:$0xf]
        %v273 = vld [vmem:[%s271 + $0x4] sm:$0xf]
        %vm274 = vsmask.f32 5376
        %v275 = vrot.slane %v232, 2
        %v276 = vrot.slane %v235, 3
        %v277 = vor.u32 %v275, %v276
        %v278 = vrot.slane %v240, 2
        %v279 = vrot.slane %v243, 3
        %v280 = vor.u32 %v278, %v279
        %v281 = vsel %vm274, %v277, %v280
        %v284 = vunpack.c.l.b16 %v272
        %v285 = vunpack.c.l.b16 %v273
        %v286 = vpack.c.b16 %v285, %v284
        %v289 = vsel %vm212, %v281, 0
        %291 = vmatpush.bf16.msra.mxu0 0
        %292 = vmatpush.bf16.msra.mxu0 0
        %293 = vmatpush.bf16.msra.mxu0 0
        %294 = vmatpush.bf16.msra.mxu0 0
        %295 = vmatpush.bf16.msra.mxu0 0
        %296 = vmatpush.bf16.msra.mxu0 0
        %297 = vmatpush.bf16.msra.mxu0 0
        %298 = vmatpush.bf16.msra.mxu0 %v286
        %299 = vmatmul.bf16.gmra.mxu0 %v289
        %v300 = vpop.f32.mrf.mxu0
        %v301 = vadd.f32 0.0, %v300
        %v302 = vpop.f32.mrf.mxu0
        %v303 = vadd.f32 0.0, %v302
        %304 = vdwg.mxu0
        %v305 = vadd.f32 %v267, %v301
        %v306 = vadd.f32 %v269, %v303
        %s307 = scalar_lea.vmem [#allocation2], 96
        %v308 = vld [vmem:[%s307] sm:$0xf]
        %v309 = vld [vmem:[%s307 + $0x4] sm:$0xf]
        %vm310 = vcmask 1044480
        %v311 = vrot.slane %v200, 3
        %v312 = vrot.slane %v201, 3
        %v313 = vsel %vm310, %v311, %v312
        %v316 = vunpack.c.l.b16 %v308
        %v317 = vunpack.c.l.b16 %v309
        %v318 = vpack.c.b16 %v317, %v316
        %v321 = vsel %vm212, %v313, 0
        %323 = vmatpush.bf16.msra.mxu0 0
        %324 = vmatpush.bf16.msra.mxu0 0
        %325 = vmatpush.bf16.msra.mxu0 0
        %326 = vmatpush.bf16.msra.mxu0 0
        %327 = vmatpush.bf16.msra.mxu0 0
        %328 = vmatpush.bf16.msra.mxu0 0
        %329 = vmatpush.bf16.msra.mxu0 0
        %330 = vmatpush.bf16.msra.mxu0 %v318
        %331 = vmatmul.bf16.gmra.mxu0 %v321
        %v332 = vpop.f32.mrf.mxu0
        %v333 = vadd.f32 0.0, %v332
        %v334 = vpop.f32.mrf.mxu0
        %v335 = vadd.f32 0.0, %v334
        %336 = vdwg.mxu0
        %v337 = vadd.f32 %v305, %v333
        %v338 = vadd.f32 %v306, %v335
        %vm339 = vcmp.ge.s32.totalorder %v187, 4294967294
        %vm340 = vcmp.ge.s32.totalorder %v188, 4294967294
        %vm341 = vcmp.le.s32.totalorder %v187, 14
        %vm342 = vcmp.le.s32.totalorder %v188, 14
        %vm343 = vmand %vm339, %vm341
        %vm344 = vmand %vm340, %vm342
        %v345 = vsel %vm343, 1, 0
        %v346 = vsel %vm344, 1, 0
        %vm347 = vcmp.eq.s32.totalorder %v345, 1
        %vm348 = vcmp.eq.s32.totalorder %v346, 1
        %v349 = vsel %vm347, %v337, 0.0
        %v350 = vsel %vm348, %v338, 0.0
        %v351 = vadd.f32 %v349, 0.0
        %v352 = vadd.f32 %v350, 0.0
        %s353 = scalar_lea.vmem [#allocation2], 8
        %v354 = vld [vmem:[%s353] sm:$0xf]
        %v355 = vld [vmem:[%s353 + $0x4] sm:$0xf]
        %s356 = scalar_lea.vmem [#allocation2], 40
        %v357 = vld [vmem:[%s356] sm:$0xf]
        %v358 = vld [vmem:[%s356 + $0x4] sm:$0xf]
        %v361 = vunpack.c.l.b16 %v357
        %v362 = vunpack.c.l.b16 %v358
        %v363 = vpack.c.b16 %v362, %v361
        %365 = vmatpush.bf16.msra.mxu0 0
        %366 = vmatpush.bf16.msra.mxu0 0
        %367 = vmatpush.bf16.msra.mxu0 0
        %368 = vmatpush.bf16.msra.mxu0 0
        %369 = vmatpush.bf16.msra.mxu0 0
        %370 = vmatpush.bf16.msra.mxu0 0
        %371 = vmatpush.bf16.msra.mxu0 0
        %372 = vmatpush.bf16.msra.mxu0 %v363
        %373 = vmatmul.bf16.gmra.mxu0 %v255
        %v374 = vpop.f32.mrf.mxu0
        %v375 = vadd.f32 0.0, %v374
        %v376 = vpop.f32.mrf.mxu0
        %v377 = vadd.f32 0.0, %v376
        %378 = vdwg.mxu0
        %vm379 = vcmask 1046528
        %v380 = vrot.slane %v200, 1
        %v381 = vrot.slane %v201, 1
        %v382 = vsel %vm379, %v380, %v381
        %v385 = vunpack.c.l.b16 %v354
        %v386 = vunpack.c.l.b16 %v355
        %v387 = vpack.c.b16 %v386, %v385
        %v390 = vsel %vm212, %v382, 0
        %392 = vmatpush.bf16.msra.mxu0 0
        %393 = vmatpush.bf16.msra.mxu0 0
        %394 = vmatpush.bf16.msra.mxu0 0
        %395 = vmatpush.bf16.msra.mxu0 0
        %396 = vmatpush.bf16.msra.mxu0 0
        %397 = vmatpush.bf16.msra.mxu0 0
        %398 = vmatpush.bf16.msra.mxu0 0
        %399 = vmatpush.bf16.msra.mxu0 %v387
        %400 = vmatmul.bf16.gmra.mxu0 %v390
        %v401 = vpop.f32.mrf.mxu0
        %v402 = vadd.f32 %v375, %v401
        %v403 = vpop.f32.mrf.mxu0
        %v404 = vadd.f32 %v377, %v403
        %405 = vdwg.mxu0
        %s406 = scalar_lea.vmem [#allocation2], 72
        %v407 = vld [vmem:[%s406] sm:$0xf]
        %v408 = vld [vmem:[%s406 + $0x4] sm:$0xf]
        %v411 = vunpack.c.l.b16 %v407
        %v412 = vunpack.c.l.b16 %v408
        %v413 = vpack.c.b16 %v412, %v411
        %415 = vmatpush.bf16.msra.mxu0 0
        %416 = vmatpush.bf16.msra.mxu0 0
        %417 = vmatpush.bf16.msra.mxu0 0
        %418 = vmatpush.bf16.msra.mxu0 0
        %419 = vmatpush.bf16.msra.mxu0 0
        %420 = vmatpush.bf16.msra.mxu0 0
        %421 = vmatpush.bf16.msra.mxu0 0
        %422 = vmatpush.bf16.msra.mxu0 %v413
        %423 = vmatmul.bf16.gmra.mxu0 %v214
        %v424 = vpop.f32.mrf.mxu0
        %v425 = vadd.f32 0.0, %v424
        %v426 = vpop.f32.mrf.mxu0
        %v427 = vadd.f32 0.0, %v426
        %428 = vdwg.mxu0
        %v429 = vadd.f32 %v402, %v425
        %v430 = vadd.f32 %v404, %v427
        %s431 = scalar_lea.vmem [#allocation2], 104
        %v432 = vld [vmem:[%s431] sm:$0xf]
        %v433 = vld [vmem:[%s431 + $0x4] sm:$0xf]
        %v436 = vunpack.c.l.b16 %v432
        %v437 = vunpack.c.l.b16 %v433
        %v438 = vpack.c.b16 %v437, %v436
        %440 = vmatpush.bf16.msra.mxu0 0
        %441 = vmatpush.bf16.msra.mxu0 0
        %442 = vmatpush.bf16.msra.mxu0 0
        %443 = vmatpush.bf16.msra.mxu0 0
        %444 = vmatpush.bf16.msra.mxu0 0
        %445 = vmatpush.bf16.msra.mxu0 0
        %446 = vmatpush.bf16.msra.mxu0 0
        %447 = vmatpush.bf16.msra.mxu0 %v438
        %448 = vmatmul.bf16.gmra.mxu0 %v289
        %v449 = vpop.f32.mrf.mxu0
        %v450 = vadd.f32 0.0, %v449
        %v451 = vpop.f32.mrf.mxu0
        %v452 = vadd.f32 0.0, %v451
        %453 = vdwg.mxu0
        %v454 = vadd.f32 %v429, %v450
        %v455 = vadd.f32 %v430, %v452
        %vm456 = vcmp.ge.s32.totalorder %v187, 4294967295
        %vm457 = vcmp.ge.s32.totalorder %v188, 4294967295
        %vm458 = vcmp.le.s32.totalorder %v187, 15
        %vm459 = vcmp.le.s32.totalorder %v188, 15
        %vm460 = vmand %vm456, %vm458
        %vm461 = vmand %vm457, %vm459
        %v462 = vsel %vm460, 1, 0
        %v463 = vsel %vm461, 1, 0
        %vm464 = vcmp.eq.s32.totalorder %v462, 1
        %vm465 = vcmp.eq.s32.totalorder %v463, 1
        %v466 = vsel %vm464, %v454, 0.0
        %v467 = vsel %vm465, %v455, 0.0
        %v468 = vadd.f32 %v351, %v466
        %v469 = vadd.f32 %v352, %v467
        %s470 = scalar_lea.vmem [#allocation2], 16
        %v471 = vld [vmem:[%s470] sm:$0xf]
        %v472 = vld [vmem:[%s470 + $0x4] sm:$0xf]
        %s473 = scalar_lea.vmem [#allocation2], 48
        %v474 = vld [vmem:[%s473] sm:$0xf]
        %v475 = vld [vmem:[%s473 + $0x4] sm:$0xf]
        %v478 = vunpack.c.l.b16 %v474
        %v479 = vunpack.c.l.b16 %v475
        %v480 = vpack.c.b16 %v479, %v478
        %482 = vmatpush.bf16.msra.mxu0 0
        %483 = vmatpush.bf16.msra.mxu0 0
        %484 = vmatpush.bf16.msra.mxu0 0
        %485 = vmatpush.bf16.msra.mxu0 0
        %486 = vmatpush.bf16.msra.mxu0 0
        %487 = vmatpush.bf16.msra.mxu0 0
        %488 = vmatpush.bf16.msra.mxu0 0
        %489 = vmatpush.bf16.msra.mxu0 %v480
        %490 = vmatmul.bf16.gmra.mxu0 %v390
        %v491 = vpop.f32.mrf.mxu0
        %v492 = vadd.f32 0.0, %v491
        %v493 = vpop.f32.mrf.mxu0
        %v494 = vadd.f32 0.0, %v493
        %495 = vdwg.mxu0
        %vm496 = vsmask.f32 7424
        %v497 = vrot.slane %v235, 1
        %v498 = vor.u32 %v232, %v497
        %v499 = vrot.slane %v243, 1
        %v500 = vsel %vm496, %v498, %v499
        %v503 = vunpack.c.l.b16 %v471
        %v504 = vunpack.c.l.b16 %v472
        %v505 = vpack.c.b16 %v504, %v503
        %v508 = vsel %vm212, %v500, 0
        %510 = vmatpush.bf16.msra.mxu0 0
        %511 = vmatpush.bf16.msra.mxu0 0
        %512 = vmatpush.bf16.msra.mxu0 0
        %513 = vmatpush.bf16.msra.mxu0 0
        %514 = vmatpush.bf16.msra.mxu0 0
        %515 = vmatpush.bf16.msra.mxu0 0
        %516 = vmatpush.bf16.msra.mxu0 0
        %517 = vmatpush.bf16.msra.mxu0 %v505
        %518 = vmatmul.bf16.gmra.mxu0 %v508
        %v519 = vpop.f32.mrf.mxu0
        %v520 = vadd.f32 %v492, %v519
        %v521 = vpop.f32.mrf.mxu0
        %v522 = vadd.f32 %v494, %v521
        %523 = vdwg.mxu0
        %s524 = scalar_lea.vmem [#allocation2], 80
        %v525 = vld [vmem:[%s524] sm:$0xf]
        %v526 = vld [vmem:[%s524 + $0x4] sm:$0xf]
        %v529 = vunpack.c.l.b16 %v525
        %v530 = vunpack.c.l.b16 %v526
        %v531 = vpack.c.b16 %v530, %v529
        %533 = vmatpush.bf16.msra.mxu0 0
        %534 = vmatpush.bf16.msra.mxu0 0
        %535 = vmatpush.bf16.msra.mxu0 0
        %536 = vmatpush.bf16.msra.mxu0 0
        %537 = vmatpush.bf16.msra.mxu0 0
        %538 = vmatpush.bf16.msra.mxu0 0
        %539 = vmatpush.bf16.msra.mxu0 0
        %540 = vmatpush.bf16.msra.mxu0 %v531
        %541 = vmatmul.bf16.gmra.mxu0 %v255
        %v542 = vpop.f32.mrf.mxu0
        %v543 = vadd.f32 0.0, %v542
        %v544 = vpop.f32.mrf.mxu0
        %v545 = vadd.f32 0.0, %v544
        %546 = vdwg.mxu0
        %v547 = vadd.f32 %v520, %v543
        %v548 = vadd.f32 %v522, %v545
        %s549 = scalar_lea.vmem [#allocation2], 112
        %v550 = vld [vmem:[%s549] sm:$0xf]
        %v551 = vld [vmem:[%s549 + $0x4] sm:$0xf]
        %v554 = vunpack.c.l.b16 %v550
        %v555 = vunpack.c.l.b16 %v551
        %v556 = vpack.c.b16 %v555, %v554
        %558 = vmatpush.bf16.msra.mxu0 0
        %559 = vmatpush.bf16.msra.mxu0 0
        %560 = vmatpush.bf16.msra.mxu0 0
        %561 = vmatpush.bf16.msra.mxu0 0
        %562 = vmatpush.bf16.msra.mxu0 0
        %563 = vmatpush.bf16.msra.mxu0 0
        %564 = vmatpush.bf16.msra.mxu0 0
        %565 = vmatpush.bf16.msra.mxu0 %v556
        %566 = vmatmul.bf16.gmra.mxu0 %v214
        %v567 = vpop.f32.mrf.mxu0
        %v568 = vadd.f32 0.0, %v567
        %v569 = vpop.f32.mrf.mxu0
        %v570 = vadd.f32 0.0, %v569
        %571 = vdwg.mxu0
        %v572 = vadd.f32 %v547, %v568
        %v573 = vadd.f32 %v548, %v570
        %vm574 = vcmp.ge.s32.totalorder %v187, 0
        %vm575 = vcmp.ge.s32.totalorder %v188, 0
        %vm576 = vcmp.le.s32.totalorder %v187, 16
        %vm577 = vcmp.le.s32.totalorder %v188, 16
        %vm578 = vmand %vm574, %vm576
        %vm579 = vmand %vm575, %vm577
        %v580 = vsel %vm578, 1, 0
        %v581 = vsel %vm579, 1, 0
        %vm582 = vcmp.eq.s32.totalorder %v580, 1
        %vm583 = vcmp.eq.s32.totalorder %v581, 1
        %v584 = vsel %vm582, %v572, 0.0
        %v585 = vsel %vm583, %v573, 0.0
        %v586 = vadd.f32 %v468, %v584
        %v587 = vadd.f32 %v469, %v585
        %s588 = scalar_lea.vmem [#allocation2], 24
        %v589 = vld [vmem:[%s588] sm:$0xf]
        %v590 = vld [vmem:[%s588 + $0x4] sm:$0xf]
        %s591 = scalar_lea.vmem [#allocation2], 56
        %v592 = vld [vmem:[%s591] sm:$0xf]
        %v593 = vld [vmem:[%s591 + $0x4] sm:$0xf]
        %v596 = vunpack.c.l.b16 %v592
        %v597 = vunpack.c.l.b16 %v593
        %v598 = vpack.c.b16 %v597, %v596
        %600 = vmatpush.bf16.msra.mxu0 0
        %601 = vmatpush.bf16.msra.mxu0 0
        %602 = vmatpush.bf16.msra.mxu0 0
        %603 = vmatpush.bf16.msra.mxu0 0
        %604 = vmatpush.bf16.msra.mxu0 0
        %605 = vmatpush.bf16.msra.mxu0 0
        %606 = vmatpush.bf16.msra.mxu0 0
        %607 = vmatpush.bf16.msra.mxu0 %v598
        %608 = vmatmul.bf16.gmra.mxu0 %v508
        %v609 = vpop.f32.mrf.mxu0
        %v610 = vadd.f32 0.0, %v609
        %v611 = vpop.f32.mrf.mxu0
        %v612 = vadd.f32 0.0, %v611
        %613 = vdwg.mxu0
        %v616 = vunpack.c.l.b16 %v589
        %v617 = vunpack.c.l.b16 %v590
        %v618 = vpack.c.b16 %v617, %v616
        %v620 = vsel %vm212, %v200, 0
        %622 = vmatpush.bf16.msra.mxu0 0
        %623 = vmatpush.bf16.msra.mxu0 0
        %624 = vmatpush.bf16.msra.mxu0 0
        %625 = vmatpush.bf16.msra.mxu0 0
        %626 = vmatpush.bf16.msra.mxu0 0
        %627 = vmatpush.bf16.msra.mxu0 0
        %628 = vmatpush.bf16.msra.mxu0 0
        %629 = vmatpush.bf16.msra.mxu0 %v618
        %630 = vmatmul.bf16.gmra.mxu0 %v620
        %v631 = vpop.f32.mrf.mxu0
        %v632 = vadd.f32 %v610, %v631
        %v633 = vpop.f32.mrf.mxu0
        %v634 = vadd.f32 %v612, %v633
        %635 = vdwg.mxu0
        %s636 = scalar_lea.vmem [#allocation2], 88
        %v637 = vld [vmem:[%s636] sm:$0xf]
        %v638 = vld [vmem:[%s636 + $0x4] sm:$0xf]
        %v641 = vunpack.c.l.b16 %v637
        %v642 = vunpack.c.l.b16 %v638
        %v643 = vpack.c.b16 %v642, %v641
        %645 = vmatpush.bf16.msra.mxu0 0
        %646 = vmatpush.bf16.msra.mxu0 0
        %647 = vmatpush.bf16.msra.mxu0 0
        %648 = vmatpush.bf16.msra.mxu0 0
        %649 = vmatpush.bf16.msra.mxu0 0
        %650 = vmatpush.bf16.msra.mxu0 0
        %651 = vmatpush.bf16.msra.mxu0 0
        %652 = vmatpush.bf16.msra.mxu0 %v643
        %653 = vmatmul.bf16.gmra.mxu0 %v390
        %v654 = vpop.f32.mrf.mxu0
        %v655 = vadd.f32 0.0, %v654
        %v656 = vpop.f32.mrf.mxu0
        %v657 = vadd.f32 0.0, %v656
        %658 = vdwg.mxu0
        %v659 = vadd.f32 %v632, %v655
        %v660 = vadd.f32 %v634, %v657
        %s661 = scalar_lea.vmem [#allocation2], 120
        %v662 = vld [vmem:[%s661] sm:$0xf]
        %v663 = vld [vmem:[%s661 + $0x4] sm:$0xf]
        %v666 = vunpack.c.l.b16 %v662
        %v667 = vunpack.c.l.b16 %v663
        %v668 = vpack.c.b16 %v667, %v666
        %670 = vmatpush.bf16.msra.mxu0 0
        %671 = vmatpush.bf16.msra.mxu0 0
        %672 = vmatpush.bf16.msra.mxu0 0
        %673 = vmatpush.bf16.msra.mxu0 0
        %674 = vmatpush.bf16.msra.mxu0 0
        %675 = vmatpush.bf16.msra.mxu0 0
        %676 = vmatpush.bf16.msra.mxu0 0
        %677 = vmatpush.bf16.msra.mxu0 %v668
        %678 = vmatmul.bf16.gmra.mxu0 %v255
        %v679 = vpop.f32.mrf.mxu0
        %v680 = vadd.f32 0.0, %v679
        %v681 = vpop.f32.mrf.mxu0
        %v682 = vadd.f32 0.0, %v681
        %683 = vdwg.mxu0
        %v684 = vadd.f32 %v659, %v680
        %v685 = vadd.f32 %v660, %v682
        %vm686 = vcmp.ge.s32.totalorder %v187, 1
        %vm687 = vcmp.ge.s32.totalorder %v188, 1
        %vm688 = vcmp.le.s32.totalorder %v187, 17
        %vm689 = vcmp.le.s32.totalorder %v188, 17
        %vm690 = vmand %vm686, %vm688
        %vm691 = vmand %vm687, %vm689
        %v692 = vsel %vm690, 1, 0
        %v693 = vsel %vm691, 1, 0
        %vm694 = vcmp.eq.s32.totalorder %v692, 1
        %vm695 = vcmp.eq.s32.totalorder %v693, 1
        %v696 = vsel %vm694, %v684, 0.0
        %v697 = vsel %vm695, %v685, 0.0
        %v698 = vadd.f32 %v586, %v696
        %v699 = vadd.f32 %v587, %v697
        %700 = vst.msk [vmem:[%s167] sm:$0xff] %vm212, %v698
        %701 = vst.msk [vmem:[%s167 + $0x8] sm:$0xff] %vm212, %v699
        %s702 = sand.u32 %s86, 1
        %s703 = scalar_lea.sflag [#allocation4], %s702
        %s704 = sand.u32 %s86, 1
        %s705 = smul.addr %s704, 16
        %s706 = scalar_lea.vmem [#allocation5], %s705
        // Predicated region
        $region33: #{tpu_custom_call.1} parent=27 // pred_check
          %p707 = pneg %p96
        $region34: #{tpu_custom_call.1} parent=27 // pred_check_branch
          %709 = sbr.rel (%p707) target = $region36
        $region35: #{tpu_custom_call.1} parent=27 // pred_region
          %s710 = smul.u32 2, %s22
          %712 = vsyncadd %s703, 0
          %s713 = smul.addr %s21, 2
          %s714 = sadd.s32 %s710, %s713
          %s715 = smul.addr %s714, 8
          %s716 = scalar_lea.hbm %s2, %s715
          %s717 = sshll.u32 %s706, 4
          %s718 = int_to_ptr.vmem [resolvable:$true] %s717
          %s719 = sshll.u32 %s716, 4
          %s720 = int_to_ptr.hbm [resolvable:$true] %s719
          %725 = dma.vmem_to_hbm [thread:$0]  %s718, 256, %s720, %s703, 128, 128, 8
        $region36: #{tpu_custom_call.1} parent=27 // pred_fallthru
          _
      $region28: #{tpu_custom_call.1} parent=5 // pred_fallthru
        _
      %p726 = scmp.le.s32.totalorder 2, %s12
      // Predicated region
      $region37: #{tpu_custom_call.1} parent=5 // pred_check
        %p727 = pneg %p726
      $region38: #{tpu_custom_call.1} parent=5 // pred_check_branch
        %729 = sbr.rel (%p727) target = $region40
      $region39: #{tpu_custom_call.1} parent=5 // pred_region
        %s730 = ssub.s32 %s12, 2
        // Predicated region
        $region41: #{tpu_custom_call.1} parent=39 // pred_check
          %p731 = pneg %p102
        $region42: #{tpu_custom_call.1} parent=39 // pred_check_branch
          %733 = sbr.rel (%p731) target = $region44
        $region43: #{tpu_custom_call.1} parent=39 // pred_region
          %s734 = sand.u32 %s87, 1
          %s735 = scalar_lea.sflag [#allocation4], %s734
          %s736 = sand.u32 %s87, 1
          %s737 = smul.addr %s736, 16
          %s738 = scalar_lea.vmem [#allocation5], %s737
          %740 = dma.done %s735, 256
        $region44: #{tpu_custom_call.1} parent=39 // pred_fallthru
          _
      $region40: #{tpu_custom_call.1} parent=5 // pred_fallthru
        _
    $region6: #{tpu_custom_call.1} parent=1 // loop_footer
      %s16 = sadd.s32 1, %s12
    $region7: #{tpu_custom_call.1} parent=1 // loop_footer_branch
      %11 = sbr.rel target = $region3
    $region8: #{tpu_custom_call.1} parent=1 // loop_exit
      _
    %741 = vsyncpa [#allocation3], 1
    %s742 = scalar_lea.sflag [#allocation3], 1
    %743 = vsyncpa %s742, 1
    %744 = vsyncpa [#allocation4], 1
    %s745 = scalar_lea.sflag [#allocation4], 1
    %746 = vsyncpa %s745, 1

</llo_original>
